<compile_context>
chip_gen: v5e
topology: v5e:2x2
jax: 0.10.0
libtpu: 0.0.40
codegen_flags: <defaults>
</compile_context>

<pallas_src>
import functools

import jax
import jax.numpy as jnp
from jax import lax
from jax.experimental import pallas as pl
from jax.experimental.pallas import tpu as pltpu


def _focal_kernel(logits_ref, targets_ref, out_ref, *, gamma, alpha,
                  num_classes):
    s_idx = pl.program_id(1)

    # Zero the resident per-b accumulator block on the first spatial tile.
    @pl.when(s_idx == 0)
    def _():
        out_ref[...] = jnp.zeros_like(out_ref)

    x = logits_ref[0].astype(jnp.float32)     # (C, tS) f32 (native dtype in HBM)
    t = targets_ref[0]                        # (1, tS) int32

    C = x.shape[0]
    cls = lax.broadcasted_iota(jnp.int32, (C, 1), 0)   # (C, 1)
    mask = cls == t                                     # (C, tS) bool

    # Numerically stable log-softmax pieces over the class (sublane) axis.
    m = jnp.max(x, axis=0, keepdims=True)     # (1, tS)
    xm = x - m
    e = jnp.exp(xm)
    ssum = jnp.sum(e, axis=0, keepdims=True)  # (1, tS)

    # Single masked gather of the target-class shifted logit (no one-hot f32,
    # no second gather: pt comes from exp(logp_t)).
    xm_t = jnp.sum(jnp.where(mask, xm, 0.0), axis=0, keepdims=True)  # (1, tS)
    logp_t = xm_t - jnp.log(ssum)             # log_softmax at target class
    ce = -logp_t                              # nll_loss, reduction='none'
    pt = jnp.exp(logp_t)                      # softmax prob of target class

    omp = 1.0 - pt
    g = float(gamma)
    if g == 2.0:
        mod = omp * omp
    elif g == 1.0:
        mod = omp
    elif g == 0.0:
        mod = jnp.ones_like(omp)
    else:
        mod = jnp.power(omp, g)

    loss = alpha * mod * ce                   # (1, tS)

    # Mask spatial padding (target == -1) and any out-of-range labels.
    valid = (t >= 0) & (t < num_classes)
    loss = jnp.where(valid, loss, 0.0)

    # Elementwise vector accumulation into the resident output block.
    out_ref[...] += loss[None]                # (1, 1, tS)


def _round_up(x, m):
    return ((x + m - 1) // m) * m


def _choose_tile_s(C, S, in_itemsize, budget_bytes):
    """Largest lane-dense (multiple of 128) spatial tile fitting the budget.

    Padding-aware: class axis rounded to the input's sublane packing, (1, tS)
    vectors rounded to 8 sublanes, realistic count of live f32 temporaries,
    double-buffered inputs and resident output block included.
    """
    sub_in = 8 * max(1, 4 // in_itemsize)     # 8 sublanes f32, 16 bf16
    c_in = _round_up(C, sub_in)
    c_f32 = _round_up(C, 8)
    s_cap = _round_up(S, 128)

    def bytes_needed(ts):
        io = 2 * (c_in * ts * in_itemsize + 8 * ts * 4) + 2 * 8 * ts * 4
        tmp = 5 * c_f32 * ts * 4 + 8 * 8 * ts * 4
        return io + tmp

    best = 128
    ts = 128
    while ts <= min(8192, s_cap):
        if bytes_needed(ts) <= budget_bytes:
            best = ts
        ts *= 2
    return min(best, s_cap)


def focal_loss_pallas(logits, targets, gamma=2.0, alpha=0.25, weights=None):
    """logits: [B, C, H, W] (f32 or bf16); targets: [B, H, W] or [B,1,H,W]."""
    if weights is not None:
        # TODO(synk): per-class nll_loss weights not implemented in the kernel.
        raise NotImplementedError("per-class weights not supported")

    B, C, H, W = logits.shape
    if targets.ndim == 4:
        targets = targets[:, 0]
    S = H * W

    # Lane-dense layout: flatten spatial dims so the last (128-lane) axis is a
    # large multiple of 128 instead of W.
    logits_f = logits.reshape(B, C, S)
    targets_f = targets.astype(jnp.int32).reshape(B, 1, S)

    # Generation-aware VMEM budget (v7x: 64 MiB, v5e/v6e: 128 MiB).
    try:
        vmem_cap = int(pltpu.get_tpu_info().vmem_capacity_bytes)
    except Exception:
        vmem_cap = 64 << 20                   # conservative (v7x) fallback
    budget = int(0.375 * vmem_cap)            # ~24 MiB v7x, ~48 MiB v6e/v5e
    vmem_limit = min(int(0.5 * vmem_cap), 96 << 20)

    in_itemsize = jnp.dtype(logits.dtype).itemsize
    tS = _choose_tile_s(C, S, in_itemsize, budget)
    S_pad = _round_up(S, tS)
    if S_pad != S:
        logits_f = jnp.pad(logits_f, ((0, 0), (0, 0), (0, S_pad - S)))
        # Padded pixels get target -1 and are masked out inside the kernel.
        targets_f = jnp.pad(targets_f, ((0, 0), (0, 0), (0, S_pad - S)),
                            constant_values=-1)
    n_s = S_pad // tS

    kernel = functools.partial(
        _focal_kernel, gamma=float(gamma), alpha=float(alpha), num_classes=C)

    cost = pl.CostEstimate(
        flops=10 * B * C * S_pad,
        transcendentals=B * C * S_pad + 3 * B * S_pad,
        bytes_accessed=logits_f.size * in_itemsize + targets_f.size * 4
        + B * tS * 4,
    )

    partials = pl.pallas_call(
        kernel,
        out_shape=jax.ShapeDtypeStruct((B, 1, tS), jnp.float32),
        grid_spec=pltpu.PrefetchScalarGridSpec(
            num_scalar_prefetch=0,
            grid=(B, n_s),
            in_specs=[
                # Native-dtype logits; no host-side upcast.
                pl.BlockSpec((1, C, tS), lambda b, s: (b, 0, s)),
                pl.BlockSpec((1, 1, tS), lambda b, s: (b, 0, s)),
            ],
            # Per-b resident vector accumulator: same block across the s axis.
            out_specs=pl.BlockSpec((1, 1, tS), lambda b, s: (b, 0, 0)),
        ),
        compiler_params=pltpu.CompilerParams(
            dimension_semantics=("parallel", "arbitrary"),
            vmem_limit_bytes=vmem_limit,
        ),
        cost_estimate=cost,
    )(logits_f, targets_f)

    # Tiny JAX epilogue: sum the per-b / per-lane partials, take the mean over
    # the ORIGINAL pixel count (padding contributed exact zeros).
    return jnp.sum(partials) * (1.0 / float(B * H * W))


def focal_loss_ref(logits, targets, gamma=2.0, alpha=0.25):
    """Pure-JAX reference mirroring the PyTorch FocalLoss forward."""
    logp = jax.nn.log_softmax(logits.astype(jnp.float32), axis=1)   # [B,C,H,W]
    idx = targets.astype(jnp.int32)[:, None, :, :]
    logp_t = jnp.take_along_axis(logp, idx, axis=1)[:, 0]           # [B,H,W]
    ce = -logp_t
    pt = jnp.exp(-ce)
    loss = alpha * (1.0 - pt) ** gamma * ce
    return jnp.mean(loss)


if __name__ == "__main__":
    key = jax.random.PRNGKey(0)

    # --- f32 path, lane-aligned-ish spatial size (S = 256) ---
    B, C, H, W = 2, 4, 16, 16
    k1, k2, k3, k4 = jax.random.split(key, 4)
    logits_f32 = jax.random.normal(k1, (B, C, H, W), dtype=jnp.float32)
    targets = jax.random.randint(k2, (B, H, W), 0, C, dtype=jnp.int32)

    loss = jax.block_until_ready(focal_loss_pallas(logits_f32, targets))
    ref = jax.block_until_ready(focal_loss_ref(logits_f32, targets))
    assert jnp.isfinite(loss), f"non-finite loss: {loss}"
    assert jnp.allclose(loss, ref, rtol=1e-5, atol=1e-5), (loss, ref)

    # --- bf16 path (native-dtype input; kernel upcasts the VMEM tile) ---
    logits_bf16 = logits_f32.astype(jnp.bfloat16)
    loss_bf = jax.block_until_ready(focal_loss_pallas(logits_bf16, targets))
    ref_bf = jax.block_until_ready(focal_loss_ref(logits_bf16, targets))
    assert jnp.isfinite(loss_bf), f"non-finite bf16 loss: {loss_bf}"
    assert jnp.allclose(loss_bf, ref_bf, rtol=1e-4, atol=1e-4), (loss_bf, ref_bf)

    # --- odd spatial size: exercises lane padding + target=-1 masking ---
    B2, C2, H2, W2 = 2, 5, 7, 9
    logits_odd = jax.random.normal(k3, (B2, C2, H2, W2), dtype=jnp.float32)
    targets_odd = jax.random.randint(k4, (B2, H2, W2), 0, C2, dtype=jnp.int32)
    loss_odd = jax.block_until_ready(focal_loss_pallas(logits_odd, targets_odd))
    ref_odd = jax.block_until_ready(focal_loss_ref(logits_odd, targets_odd))
    assert jnp.isfinite(loss_odd), f"non-finite odd-shape loss: {loss_odd}"
    assert jnp.allclose(loss_odd, ref_odd, rtol=1e-5, atol=1e-5), (loss_odd,
                                                                   ref_odd)

    print("KERNEL_OK")
</pallas_src>

<mosaic_0001>
module attributes {stable_mosaic.version = 11 : i64} {
  func.func @_focal_kernel(%arg0: i32, %arg1: i32, %arg2: memref<1x4x256xf32, #tpu.memory_space<vmem>>, %arg3: memref<1x1x256xi32, #tpu.memory_space<vmem>>, %arg4: memref<1x1x256xf32, #tpu.memory_space<vmem>>) attributes {dimension_semantics = [#tpu.dimension_semantics<parallel>, #tpu.dimension_semantics<arbitrary>], iteration_bounds = array<i64: 2, 1>, scalar_prefetch = 0 : i64, scratch_operands = 0 : i64, tpu.core_type = #tpu.core_type<tc>, window_params = [{transform_indices = @transform_0, window_bounds = array<i64: 1, 4, 256>}, {transform_indices = @transform_1, window_bounds = array<i64: 1, 1, 256>}, {transform_indices = @transform_2, window_bounds = array<i64: 1, 1, 256>}]} {
    %c0_i32 = arith.constant 0 : i32
    %0 = arith.cmpi eq, %arg1, %c0_i32 : i32
    %1 = arith.extui %0 : i1 to i32
    %c0_i32_0 = arith.constant 0 : i32
    %2 = arith.cmpi ne, %1, %c0_i32_0 : i32
    scf.if %2 {
      %cst_20 = arith.constant 0.000000e+00 : f32
      %44 = vector.broadcast %cst_20 : f32 to vector<1x1x256xf32>
      %c0_21 = arith.constant 0 : index
      %c0_22 = arith.constant 0 : index
      %c0_23 = arith.constant 0 : index
      %45 = vector.load %arg4[%c0_21, %c0_22, %c0_23] : memref<1x1x256xf32, #tpu.memory_space<vmem>>, vector<1x1x256xf32>
      tpu.vector_store %arg4[%c0_21, %c0_22, %c0_23], %44 {strides = array<i32>} : memref<1x1x256xf32, #tpu.memory_space<vmem>>, vector<1x1x256xf32>,
    } else {
    }
    %c0 = arith.constant 0 : index
    %c0_1 = arith.constant 0 : index
    %c0_2 = arith.constant 0 : index
    %3 = vector.load %arg2[%c0, %c0_1, %c0_2] : memref<1x4x256xf32, #tpu.memory_space<vmem>>, vector<1x4x256xf32>
    %4 = vector.shape_cast %3 : vector<1x4x256xf32> to vector<4x256xf32>
    %c0_3 = arith.constant 0 : index
    %c0_4 = arith.constant 0 : index
    %c0_5 = arith.constant 0 : index
    %5 = vector.load %arg3[%c0_3, %c0_4, %c0_5] : memref<1x1x256xi32, #tpu.memory_space<vmem>>, vector<1x1x256xi32>
    %6 = vector.shape_cast %5 : vector<1x1x256xi32> to vector<1x256xi32>
    %7 = tpu.iota {dimensions = array<i32: 0>} : vector<4x1xi32>
    %8 = vector.broadcast %7 : vector<4x1xi32> to vector<4x256xi32>
    %9 = vector.broadcast %6 : vector<1x256xi32> to vector<4x256xi32>
    %10 = arith.cmpi eq, %8, %9 : vector<4x256xi32>
    %cst = arith.constant dense<0xFF800000> : vector<256xf32>
    %11 = vector.multi_reduction <maximumf>, %4, %cst [0] : vector<4x256xf32> to vector<256xf32>
    %12 = vector.shape_cast %11 : vector<256xf32> to vector<1x256xf32>
    %13 = vector.broadcast %12 : vector<1x256xf32> to vector<4x256xf32>
    %14 = arith.subf %4, %13 : vector<4x256xf32>
    %15 = math.exp %14 : vector<4x256xf32>
    %cst_6 = arith.constant dense<0.000000e+00> : vector<256xf32>
    %16 = vector.multi_reduction <add>, %15, %cst_6 [0] : vector<4x256xf32> to vector<256xf32>
    %17 = vector.shape_cast %16 : vector<256xf32> to vector<1x256xf32>
    %cst_7 = arith.constant 0.000000e+00 : f32
    %18 = vector.broadcast %cst_7 : f32 to vector<4x256xf32>
    %19 = arith.select %10, %14, %18 : vector<4x256xi1>, vector<4x256xf32>
    %cst_8 = arith.constant dense<0.000000e+00> : vector<256xf32>
    %20 = vector.multi_reduction <add>, %19, %cst_8 [0] : vector<4x256xf32> to vector<256xf32>
    %21 = vector.shape_cast %20 : vector<256xf32> to vector<1x256xf32>
    %22 = math.log %17 : vector<1x256xf32>
    %23 = arith.subf %21, %22 : vector<1x256xf32>
    %cst_9 = arith.constant 0.000000e+00 : f32
    %24 = vector.broadcast %cst_9 : f32 to vector<1x256xf32>
    %25 = arith.subf %24, %23 : vector<1x256xf32>
    %26 = math.exp %23 : vector<1x256xf32>
    %cst_10 = arith.constant 1.000000e+00 : f32
    %27 = vector.broadcast %cst_10 : f32 to vector<1x256xf32>
    %28 = arith.subf %27, %26 : vector<1x256xf32>
    %29 = arith.mulf %28, %28 : vector<1x256xf32>
    %cst_11 = arith.constant 2.500000e-01 : f32
    %30 = vector.broadcast %cst_11 : f32 to vector<1x256xf32>
    %31 = arith.mulf %30, %29 : vector<1x256xf32>
    %32 = arith.mulf %31, %25 : vector<1x256xf32>
    %c0_i32_12 = arith.constant 0 : i32
    %33 = vector.broadcast %c0_i32_12 : i32 to vector<1x256xi32>
    %34 = arith.cmpi sge, %6, %33 : vector<1x256xi32>
    %c4_i32 = arith.constant 4 : i32
    %35 = vector.broadcast %c4_i32 : i32 to vector<1x256xi32>
    %36 = arith.cmpi slt, %6, %35 : vector<1x256xi32>
    %37 = arith.andi %34, %36 : vector<1x256xi1>
    %cst_13 = arith.constant 0.000000e+00 : f32
    %38 = vector.broadcast %cst_13 : f32 to vector<1x256xf32>
    %39 = arith.select %37, %32, %38 : vector<1x256xi1>, vector<1x256xf32>
    %c0_14 = arith.constant 0 : index
    %c0_15 = arith.constant 0 : index
    %c0_16 = arith.constant 0 : index
    %40 = vector.load %arg4[%c0_14, %c0_15, %c0_16] : memref<1x1x256xf32, #tpu.memory_space<vmem>>, vector<1x1x256xf32>
    %41 = vector.shape_cast %39 : vector<1x256xf32> to vector<1x1x256xf32>
    %42 = arith.addf %40, %41 : vector<1x1x256xf32>
    %c0_17 = arith.constant 0 : index
    %c0_18 = arith.constant 0 : index
    %c0_19 = arith.constant 0 : index
    %43 = vector.load %arg4[%c0_17, %c0_18, %c0_19] : memref<1x1x256xf32, #tpu.memory_space<vmem>>, vector<1x1x256xf32>
    tpu.vector_store %arg4[%c0_17, %c0_18, %c0_19], %42 {strides = array<i32>} : memref<1x1x256xf32, #tpu.memory_space<vmem>>, vector<1x1x256xf32>,
    return
  }
  func.func @transform_0(%arg0: i32, %arg1: i32) -> (i32, i32, i32) {
    %c0_i32 = arith.constant 0 : i32
    %c0_i32_0 = arith.constant 0 : i32
    return %arg0, %c0_i32, %arg1 : i32, i32, i32
  }
  func.func @transform_1(%arg0: i32, %arg1: i32) -> (i32, i32, i32) {
    %c0_i32 = arith.constant 0 : i32
    %c0_i32_0 = arith.constant 0 : i32
    return %arg0, %c0_i32, %arg1 : i32, i32, i32
  }
  func.func @transform_2(%arg0: i32, %arg1: i32) -> (i32, i32, i32) {
    %c0_i32 = arith.constant 0 : i32
    %c0_i32_0 = arith.constant 0 : i32
    %c0_i32_1 = arith.constant 0 : i32
    return %arg0, %c0_i32, %c0_i32_0 : i32, i32, i32
  }
}

</mosaic_0001>

<llo_original>
// kernel: tpu_custom_call.1
$region0: #{tpu_custom_call.1}
  #allocation0 [shape = 'u32[]', space=smem, size = 0x4, offset = 0x4, fixed_abs, tag = 'smem constant byte address 0x4 - core index']
  #allocation1 [shape = 'u32[72,128]{1,0:T(1,128)}', space=vmem, size = 0x9000, scoped, tag = 'internal scratch']
  %s0 = inlined_call_operand.hbm [shape: f32[2,4,256], index: 0, kind: input, shape index: {}]
  %s1 = inlined_call_operand.hbm [shape: s32[2,1,256], index: 1, kind: input, shape index: {}]
  %s2 = inlined_call_operand.hbm [shape: f32[2,1,256], index: 2, kind: output, shape index: {}]
  %s3 = sld [smem:[#allocation0]]
  $region53: #{tpu_custom_call.1} parent=0
    _
  %s5 = ssub.s32 1, %s3
  %s6 = scalar_select 0, %s5, %s3
  $region1: #{tpu_custom_call.1} parent=0
    #allocation2 [shape = 'u8[8192]{0}', space=vmem, size = 0x2000, scoped, tag = 'input window, operand 0']
    #allocation3 [shape = 's32[2]{0}', space=sflag, size = 0x8, scoped, tag = 'scoped memory for tpu_custom_call.1']
    #allocation4 [shape = 's32[2]{0}', space=sflag, size = 0x8, scoped, tag = 'scoped memory for tpu_custom_call.1']
    #allocation5 [shape = 'u8[2048]{0}', space=vmem, size = 0x800, scoped, tag = 'input window, operand 1']
    #allocation6 [shape = 's32[2]{0}', space=sflag, size = 0x8, scoped, tag = 'scoped memory for tpu_custom_call.1']
    #allocation7 [shape = 'u8[2048]{0}', space=vmem, size = 0x800, scoped, tag = 'output window, operand 0']
    %7 = vsyncpa [#allocation3], 0
    %s8 = scalar_lea.sflag [#allocation3], 1
    %9 = vsyncpa %s8, 0
    %10 = vsyncpa [#allocation6], 0
    %s11 = scalar_lea.sflag [#allocation6], 1
    %12 = vsyncpa %s11, 0
    %13 = vsyncpa [#allocation4], 0
    %s14 = scalar_lea.sflag [#allocation4], 1
    %15 = vsyncpa %s14, 0
    loop: start=0, step=1, limit=4
    $region2: #{tpu_custom_call.1} parent=1 // loop_pre_header
      _
    $region3: #{tpu_custom_call.1} parent=1 // loop_header
      %s17 = sphi 0, %s21
      %p18 = scmp.ge.s32.totalorder %s17, 4
      %s24 = sphi 0, %s36
      %s25 = sphi 0, %s32
      %s26 = sphi 0, %s24
      %s27 = sphi 0, %s25
      %s28 = sphi 0, %s26
      %s29 = sphi 0, %s27
      %s41 = sphi 0, %s43
      %s44 = sphi 0, %s41
      %s45 = sphi 0, %s44
      %s61 = sphi 0, %s45
      %s69 = sphi 0, %s71
      %s72 = sphi 0, %s69
      %s73 = sphi 0, %s72
      %s89 = sphi 0, %s73
      %s95 = sphi 0, %s97
      %s98 = sphi 0, %s95
      %s99 = sphi 0, %s98
      %s115 = sphi 0, %s99
    $region4: #{tpu_custom_call.1} parent=1 // loop_header_branch
      %20 = sbr.rel (%p18) target = $region8
    $region5: #{tpu_custom_call.1} parent=1 // loop_body
      %s22 = ssub.s32 %s17, 1
      %s23 = ssub.s32 %s17, 2
      %s30 = sadd.s32 1, %s25
      %p31 = scmp.ge.s32.totalorder %s30, 1
      %s32 = scalar_select %p31, 0, %s30
      %s33 = sadd.s32 1, %s24
      %s34 = scalar_select %p31, %s33, %s24
      %p35 = scmp.ge.s32.totalorder %s34, 2
      %s36 = scalar_select %p35, 0, %s34
      %s37 = ssub.s32 %s24, %s36
      %s38 = ssub.s32 %s25, %s32
      %s39 = sor.u32 %s37, %s38
      %p40 = scmp.eq.s32.totalorder %s39, 0
      %s42 = sadd.s32 %s41, 1
      %s43 = scalar_select %p40, %s41, %s42
      %p46 = pneg %p40
      %p47 = scmp.eq.s32.totalorder %s17, 1
      %p48 = por %p46, %p47
      %p49 = scmp.ne.s32.totalorder %s41, %s44
      %p50 = scmp.eq.s32.totalorder %s17, 0
      %p51 = por %p49, %p50
      %p52 = scmp.ne.s32.totalorder %s41, %s44
      %p53 = scmp.eq.s32.totalorder %s22, 1
      %p54 = por %p52, %p53
      %p55 = scmp.ne.s32.totalorder %s44, %s45
      %p56 = scmp.eq.s32.totalorder %s22, 0
      %p57 = por %p55, %p56
      %p58 = scmp.ne.s32.totalorder %s44, %s45
      %p59 = scmp.eq.s32.totalorder %s23, 1
      %p60 = por %p58, %p59
      %p62 = scmp.ne.s32.totalorder %s45, %s61
      %p63 = scmp.eq.s32.totalorder %s23, 0
      %p64 = por %p62, %p63
      %s65 = ssub.s32 %s24, %s36
      %s66 = ssub.s32 %s25, %s32
      %s67 = sor.u32 %s65, %s66
      %p68 = scmp.eq.s32.totalorder %s67, 0
      %s70 = sadd.s32 %s69, 1
      %s71 = scalar_select %p68, %s69, %s70
      %p74 = pneg %p68
      %p75 = scmp.eq.s32.totalorder %s17, 1
      %p76 = por %p74, %p75
      %p77 = scmp.ne.s32.totalorder %s69, %s72
      %p78 = scmp.eq.s32.totalorder %s17, 0
      %p79 = por %p77, %p78
      %p80 = scmp.ne.s32.totalorder %s69, %s72
      %p81 = scmp.eq.s32.totalorder %s22, 1
      %p82 = por %p80, %p81
      %p83 = scmp.ne.s32.totalorder %s72, %s73
      %p84 = scmp.eq.s32.totalorder %s22, 0
      %p85 = por %p83, %p84
      %p86 = scmp.ne.s32.totalorder %s72, %s73
      %p87 = scmp.eq.s32.totalorder %s23, 1
      %p88 = por %p86, %p87
      %p90 = scmp.ne.s32.totalorder %s73, %s89
      %p91 = scmp.eq.s32.totalorder %s23, 0
      %p92 = por %p90, %p91
      %s93 = ssub.s32 %s24, %s36
      %p94 = scmp.eq.s32.totalorder %s93, 0
      %s96 = sadd.s32 %s95, 1
      %s97 = scalar_select %p94, %s95, %s96
      %p100 = pneg %p94
      %p101 = scmp.eq.s32.totalorder %s17, 1
      %p102 = por %p100, %p101
      %p103 = scmp.ne.s32.totalorder %s95, %s98
      %p104 = scmp.eq.s32.totalorder %s17, 0
      %p105 = por %p103, %p104
      %p106 = scmp.ne.s32.totalorder %s95, %s98
      %p107 = scmp.eq.s32.totalorder %s22, 1
      %p108 = por %p106, %p107
      %p109 = scmp.ne.s32.totalorder %s98, %s99
      %p110 = scmp.eq.s32.totalorder %s22, 0
      %p111 = por %p109, %p110
      %p112 = scmp.ne.s32.totalorder %s98, %s99
      %p113 = scmp.eq.s32.totalorder %s23, 1
      %p114 = por %p112, %p113
      %p116 = scmp.ne.s32.totalorder %s99, %s115
      %p117 = scmp.eq.s32.totalorder %s23, 0
      %p118 = por %p116, %p117
      %p119 = scmp.le.s32.totalorder 1, %s17
      %p120 = scmp.lt.s32.totalorder %s17, 3
      %p121 = pnand %p119, %p120
      %p122 = pneg %p121
      // Predicated region
      $region9: #{tpu_custom_call.1} parent=5 // pred_check
        _
      $region10: #{tpu_custom_call.1} parent=5 // pred_check_branch
        %124 = sbr.rel (%p121) target = $region12
      $region11: #{tpu_custom_call.1} parent=5 // pred_region
        %s125 = ssub.s32 %s17, 1
      $region12: #{tpu_custom_call.1} parent=5 // pred_fallthru
        _
      %p126 = scmp.lt.s32.totalorder %s17, 2
      // Predicated region
      $region13: #{tpu_custom_call.1} parent=5 // pred_check
        %p127 = pneg %p126
      $region14: #{tpu_custom_call.1} parent=5 // pred_check_branch
        %129 = sbr.rel (%p127) target = $region16
      $region15: #{tpu_custom_call.1} parent=5 // pred_region
        // Predicated region
        $region17: #{tpu_custom_call.1} parent=15 // pred_check
          %p130 = pneg %p51
        $region18: #{tpu_custom_call.1} parent=15 // pred_check_branch
          %132 = sbr.rel (%p130) target = $region20
        $region19: #{tpu_custom_call.1} parent=15 // pred_region
          %s133 = sand.u32 %s41, 1
          %s134 = scalar_lea.sflag [#allocation3], %s133
          %s135 = sand.u32 %s41, 1
          %s136 = smul.addr %s135, 8
          %s137 = scalar_lea.vmem [#allocation2], %s136
          %s138 = smul.u32 2, %s25
          %140 = vsyncadd %s134, 0
          %s141 = smul.addr %s24, 2
          %s142 = sadd.s32 %s138, %s141
          %s143 = smul.addr %s142, 4
          %s144 = scalar_lea.hbm %s0, %s143
          %s146 = sshll.u32 %s144, 4
          %s147 = int_to_ptr.hbm [resolvable:$true] %s146
          %s148 = sshll.u32 %s137, 4
          %s149 = int_to_ptr.vmem [resolvable:$true] %s148
          %151 = dma.hbm_to_vmem [thread:$0]  %s147, 128, %s149, %s134
        $region20: #{tpu_custom_call.1} parent=15 // pred_fallthru
          _
        // Predicated region
        $region21: #{tpu_custom_call.1} parent=15 // pred_check
          %p152 = pneg %p79
        $region22: #{tpu_custom_call.1} parent=15 // pred_check_branch
          %154 = sbr.rel (%p152) target = $region24
        $region23: #{tpu_custom_call.1} parent=15 // pred_region
          %s155 = sand.u32 %s69, 1
          %s156 = scalar_lea.sflag [#allocation6], %s155
          %s157 = sand.u32 %s69, 1
          %s158 = smul.addr %s157, 2
          %s159 = scalar_lea.vmem [#allocation5], %s158
          %s160 = smul.u32 2, %s25
          %162 = vsyncadd %s156, 0
          %s163 = smul.addr %s24, 2
          %s164 = sadd.s32 %s160, %s163
          %s165 = scalar_lea.hbm %s1, %s164
          %s167 = sshll.u32 %s165, 4
          %s168 = int_to_ptr.hbm [resolvable:$true] %s167
          %s169 = sshll.u32 %s159, 4
          %s170 = int_to_ptr.vmem [resolvable:$true] %s169
          %172 = dma.hbm_to_vmem [thread:$0]  %s168, 32, %s170, %s156
        $region24: #{tpu_custom_call.1} parent=15 // pred_fallthru
          _
      $region16: #{tpu_custom_call.1} parent=5 // pred_fallthru
        _
      %p173 = scmp.le.s32.totalorder 1, %s17
      %p174 = scmp.lt.s32.totalorder %s17, 3
      %p175 = pnand %p173, %p174
      %p176 = pneg %p175
      // Predicated region
      $region25: #{tpu_custom_call.1} parent=5 // pred_check
        _
      $region26: #{tpu_custom_call.1} parent=5 // pred_check_branch
        %178 = sbr.rel (%p175) target = $region28
      $region27: #{tpu_custom_call.1} parent=5 // pred_region
        %s179 = ssub.s32 %s17, 1
        %s180 = sand.u32 %s44, 1
        %s181 = scalar_lea.sflag [#allocation3], %s180
        %s182 = sand.u32 %s44, 1
        %s183 = smul.addr %s182, 8
        %s184 = scalar_lea.vmem [#allocation2], %s183
        // Predicated region
        $region29: #{tpu_custom_call.1} parent=27 // pred_check
          %p185 = pneg %p57
        $region30: #{tpu_custom_call.1} parent=27 // pred_check_branch
          %187 = sbr.rel (%p185) target = $region32
        $region31: #{tpu_custom_call.1} parent=27 // pred_region
          %189 = dma.done %s181, 128
        $region32: #{tpu_custom_call.1} parent=27 // pred_fallthru
          _
        %s190 = sand.u32 %s72, 1
        %s191 = scalar_lea.sflag [#allocation6], %s190
        %s192 = sand.u32 %s72, 1
        %s193 = smul.addr %s192, 2
        %s194 = scalar_lea.vmem [#allocation5], %s193
        // Predicated region
        $region33: #{tpu_custom_call.1} parent=27 // pred_check
          %p195 = pneg %p85
        $region34: #{tpu_custom_call.1} parent=27 // pred_check_branch
          %197 = sbr.rel (%p195) target = $region36
        $region35: #{tpu_custom_call.1} parent=27 // pred_region
          %199 = dma.done %s191, 32
        $region36: #{tpu_custom_call.1} parent=27 // pred_fallthru
          _
        %s200 = sand.u32 %s44, 1
        %s201 = scalar_lea.sflag [#allocation3], %s200
        %s202 = sand.u32 %s44, 1
        %s203 = smul.addr %s202, 8
        %s204 = scalar_lea.vmem [#allocation2], %s203
        %p205 = pneg %p57
        %p206 = pneg %p54
        %s207 = sand.u32 %s72, 1
        %s208 = scalar_lea.sflag [#allocation6], %s207
        %s209 = sand.u32 %s72, 1
        %s210 = smul.addr %s209, 2
        %s211 = scalar_lea.vmem [#allocation5], %s210
        %p212 = pneg %p85
        %p213 = pneg %p82
        %p214 = pneg %p111
        %p215 = pneg %p108
        %s216 = sand.u32 %s98, 1
        %s217 = scalar_lea.sflag [#allocation4], %s216
        %s218 = sand.u32 %s98, 1
        %s219 = smul.addr %s218, 2
        %s220 = scalar_lea.vmem [#allocation7], %s219
        %s221 = smul.u32 2, %s27
        %s222 = smul.u32 2, %s27
        %p223 = scmp.eq.s32.totalorder %s27, 0
        // Predicated region
        $region37: #{tpu_custom_call.1} parent=27 // pred_check
          %p224 = pneg %p223
        $region38: #{tpu_custom_call.1} parent=27 // pred_check_branch
          %226 = sbr.rel (%p224) target = $region40
        $region39: #{tpu_custom_call.1} parent=27 // pred_region
          %v227 = vlaneseq
          %vm228 = vcmp.ge.s32.totalorder %v227, 0
          %vm229 = vcmp.lt.s32.totalorder %v227, 256
          %vm230 = vmand %vm228, %vm229
          %231 = vst.msk [vmem:[%s220] sm:$0x3] %vm230, 0.0
        $region40: #{tpu_custom_call.1} parent=27 // pred_fallthru
          _
        %v232 = vld [vmem:[%s184] sm:$0xff]
        %v233 = vld [vmem:[%s194] sm:$0x3]
        %v234 = vlaneseq
        %v235 = vshrl.u32 %v234, 7
        %v236 = vperm.slane %v233, 0
        %v237 = vperm.slane %v233, 1
        %vm238 = vcmp.eq.s32.totalorder %v235, %v236
        %vm239 = vcmp.eq.s32.totalorder %v235, %v237
        %241 = vst [vmem:[#allocation1] ss:$2 sm:$0xff] %v232
        %v242 = vld.sshfl [vmem:[#allocation1] sm:$0xff pattern:$0x75316420]
        %v243 = vld.sshfl [vmem:[#allocation1 + $0x8] sm:$0xff pattern:$0x75316420]
        %vm246 = vcmask 1043456
        %v247 = vsel %vm246, %v242, -inf
        %v248 = vrot.slane %v247, 4
        %v249 = vmax.f32 %v247, %v248
        %v250 = vrot.slane %v249, 2
        %v251 = vmax.f32 %v249, %v250
        %v252 = vrot.slane %v251, 1
        %v253 = vmax.f32 %v251, %v252
        %v254 = vsel %vm246, %v243, -inf
        %v255 = vrot.slane %v254, 4
        %v256 = vmax.f32 %v254, %v255
        %v257 = vrot.slane %v256, 2
        %v258 = vmax.f32 %v256, %v257
        %v259 = vrot.slane %v258, 1
        %v260 = vmax.f32 %v258, %v259
        %v263 = vrot.slane %v260, 4
        %v264 = vsel %vm246, %v253, %v263
        %v266 = vsub.f32 %v232, %v264
        %v267 = vmul.f32 %v266, 1.442695
        %v268 = vpow.pop %v267
        %270 = vst [vmem:[#allocation1] ss:$2 sm:$0xff] %v268
        %v271 = vld.sshfl [vmem:[#allocation1] sm:$0xff pattern:$0x75316420]
        %v272 = vld.sshfl [vmem:[#allocation1 + $0x8] sm:$0xff pattern:$0x75316420]
        %v275 = vsel %vm246, %v271, 0.0
        %v276 = vrot.slane %v275, 4
        %v277 = vadd.f32 %v275, %v276
        %v278 = vrot.slane %v277, 2
        %v279 = vadd.f32 %v277, %v278
        %v280 = vrot.slane %v279, 1
        %v281 = vadd.f32 %v279, %v280
        %v282 = vsel %vm246, %v272, 0.0
        %v283 = vrot.slane %v282, 4
        %v284 = vadd.f32 %v282, %v283
        %v285 = vrot.slane %v284, 2
        %v286 = vadd.f32 %v284, %v285
        %v287 = vrot.slane %v286, 1
        %v288 = vadd.f32 %v286, %v287
        %290 = vst [vmem:[#allocation1] ss:$2 sm:$0xff] %v266
        %v291 = vld.sshfl [vmem:[#allocation1] sm:$0xff pattern:$0x75316420]
        %v292 = vld.sshfl [vmem:[#allocation1 + $0x8] sm:$0xff pattern:$0x75316420]
        %v295 = vsel %vm238, %v291, 0.0
        %v296 = vsel %vm239, %v292, 0.0
        %v297 = vsel %vm246, %v295, 0.0
        %v298 = vrot.slane %v297, 4
        %v299 = vadd.f32 %v297, %v298
        %v300 = vrot.slane %v299, 2
        %v301 = vadd.f32 %v299, %v300
        %v302 = vrot.slane %v301, 1
        %v303 = vadd.f32 %v301, %v302
        %v304 = vsel %vm246, %v296, 0.0
        %v305 = vrot.slane %v304, 4
        %v306 = vadd.f32 %v304, %v305
        %v307 = vrot.slane %v306, 2
        %v308 = vadd.f32 %v306, %v307
        %v309 = vrot.slane %v308, 1
        %v310 = vadd.f32 %v308, %v309
        %v311 = vlog2.pop %v281
        %v312 = vmul.f32 %v311, 0.6931472
        %v313 = vlog2.pop %v288
        %v314 = vmul.f32 %v313, 0.6931472
        %v315 = vsub.f32 %v303, %v312
        %v316 = vsub.f32 %v310, %v314
        %v317 = vsub.f32 0.0, %v315
        %v318 = vsub.f32 0.0, %v316
        %v319 = vmul.f32 %v315, 1.442695
        %v320 = vpow.pop %v319
        %v321 = vmul.f32 %v316, 1.442695
        %v322 = vpow.pop %v321
        %v323 = vsub.f32 1.0, %v320
        %v324 = vsub.f32 1.0, %v322
        %v325 = vmul.f32 %v323, %v323
        %v326 = vmul.f32 %v324, %v324
        %v327 = vmul.f32 %v325, 0.25
        %v328 = vmul.f32 %v326, 0.25
        %v329 = vmul.f32 %v327, %v317
        %v330 = vmul.f32 %v328, %v318
        %vm331 = vcmp.ge.s32.totalorder %v233, 0
        %vm332 = vcmp.lt.s32.totalorder %v233, 4
        %vm333 = vmand %vm331, %vm332
        %v336 = vrot.slane %v330, 7
        %vm337 = vcmask 1040384
        %v338 = vsel %vm337, %v329, %v336
        %v340 = vsel %vm333, %v338, 0.0
        %v341 = vld [vmem:[%s220] sm:$0x3]
        %v342 = vadd.f32 %v341, %v340
        %v343 = vlaneseq
        %vm344 = vcmp.ge.s32.totalorder %v343, 0
        %vm345 = vcmp.lt.s32.totalorder %v343, 256
        %vm346 = vmand %vm344, %vm345
        %347 = vst.msk [vmem:[%s220] sm:$0x3] %vm346, %v342
        %s348 = sand.u32 %s98, 1
        %s349 = scalar_lea.sflag [#allocation4], %s348
        %s350 = sand.u32 %s98, 1
        %s351 = smul.addr %s350, 2
        %s352 = scalar_lea.vmem [#allocation7], %s351
        // Predicated region
        $region41: #{tpu_custom_call.1} parent=27 // pred_check
          %p353 = pneg %p108
        $region42: #{tpu_custom_call.1} parent=27 // pred_check_branch
          %355 = sbr.rel (%p353) target = $region44
        $region43: #{tpu_custom_call.1} parent=27 // pred_region
          %357 = vsyncadd %s349, 0
          %s358 = smul.addr %s26, 2
          %s359 = scalar_lea.hbm %s2, %s358
          %s361 = sshll.u32 %s352, 4
          %s362 = int_to_ptr.vmem [resolvable:$true] %s361
          %s363 = sshll.u32 %s359, 4
          %s364 = int_to_ptr.hbm [resolvable:$true] %s363
          %366 = dma.vmem_to_hbm [thread:$0]  %s362, 32, %s364, %s349
        $region44: #{tpu_custom_call.1} parent=27 // pred_fallthru
          _
      $region28: #{tpu_custom_call.1} parent=5 // pred_fallthru
        _
      %p367 = scmp.le.s32.totalorder 2, %s17
      // Predicated region
      $region45: #{tpu_custom_call.1} parent=5 // pred_check
        %p368 = pneg %p367
      $region46: #{tpu_custom_call.1} parent=5 // pred_check_branch
        %370 = sbr.rel (%p368) target = $region48
      $region47: #{tpu_custom_call.1} parent=5 // pred_region
        %s371 = ssub.s32 %s17, 2
        // Predicated region
        $region49: #{tpu_custom_call.1} parent=47 // pred_check
          %p372 = pneg %p114
        $region50: #{tpu_custom_call.1} parent=47 // pred_check_branch
          %374 = sbr.rel (%p372) target = $region52
        $region51: #{tpu_custom_call.1} parent=47 // pred_region
          %s375 = sand.u32 %s99, 1
          %s376 = scalar_lea.sflag [#allocation4], %s375
          %s377 = sand.u32 %s99, 1
          %s378 = smul.addr %s377, 2
          %s379 = scalar_lea.vmem [#allocation7], %s378
          %381 = dma.done %s376, 32
        $region52: #{tpu_custom_call.1} parent=47 // pred_fallthru
          _
      $region48: #{tpu_custom_call.1} parent=5 // pred_fallthru
        _
    $region6: #{tpu_custom_call.1} parent=1 // loop_footer
      %s21 = sadd.s32 1, %s17
    $region7: #{tpu_custom_call.1} parent=1 // loop_footer_branch
      %16 = sbr.rel target = $region3
    $region8: #{tpu_custom_call.1} parent=1 // loop_exit
      _
    %382 = vsyncpa [#allocation3], 1
    %s383 = scalar_lea.sflag [#allocation3], 1
    %384 = vsyncpa %s383, 1
    %385 = vsyncpa [#allocation6], 1
    %s386 = scalar_lea.sflag [#allocation6], 1
    %387 = vsyncpa %s386, 1
    %388 = vsyncpa [#allocation4], 1
    %s389 = scalar_lea.sflag [#allocation4], 1
    %390 = vsyncpa %s389, 1

</llo_original>
